<compile_context>
chip_gen: v6e
topology: v6e:2x2x1
jax: 0.10.0
libtpu: 0.0.40
codegen_flags: <defaults>
</compile_context>

<pallas_src>
import math

import jax
import jax.numpy as jnp
from jax.experimental import pallas as pl
from jax.experimental.pallas import tpu as pltpu

# ----------------------------- config (small) --------------------------------
S = 8            # sequence length (q_len)
H = 32           # hidden_size
NQ = 4           # num_attention_heads
NKV = 2          # num_key_value_heads
DH = H // NQ     # head_dim = 8
GROUPS = NQ // NKV
INTER = 64       # intermediate_size
EPS = 1e-6       # rms_norm_eps
ROPE_THETA = 10000.0
NEG_INF = -1e30
SCALE = 1.0 / math.sqrt(DH)

QK = (NQ + NKV) * DH          # fused Q‖K width (48)
QKV_W = 2 * QK + NKV * DH     # fused projection width (112)


def _rms_norm(x, w):
    # LlamaRMSNorm: x * rsqrt(mean(x^2) + eps) * weight   (f32 VPU math)
    var = jnp.mean(x * x, axis=-1, keepdims=True)
    return x * jax.lax.rsqrt(var + EPS) * w


# --------------------------------- kernel -------------------------------------
def decoder_kernel(x_ref, wqkv_ref, wo_ref, wgu_ref, wd_ref,
                   cos_ref, sin_ref, ln1_ref, ln2_ref, out_ref):
    x = x_ref[...]                                  # [S, H]   f32

    # ---- input_layernorm ----
    h = _rms_norm(x, ln1_ref[...])
    h_bf = h.astype(jnp.bfloat16)                   # single cast for all projections

    # ---- fused Q‖K‖Qrot‖Krot‖V projection: ONE wide MXU dot ----
    qkv = jnp.dot(h_bf, wqkv_ref[...],
                  preferred_element_type=jnp.float32)        # [S, 112] f32

    qk = qkv[:, :QK]                 # Q heads ‖ K heads           [S, 48]
    qkr = qkv[:, QK:2 * QK]          # rotate_half-folded versions [S, 48]
    v_all = qkv[:, 2 * QK:]          # V heads                     [S, 16]

    # RoPE for all Q and K heads at once (rotation folded into qkr weights;
    # 1/sqrt(DH) pre-folded into the Q portion of cos/sin in the wrapper).
    qk = qk * cos_ref[...] + qkr * sin_ref[...]
    qk_bf = qk.astype(jnp.bfloat16)
    v_bf = v_all.astype(jnp.bfloat16)

    # causal mask (diagonal kept, so exp(scores - m) is safe)
    row = jax.lax.broadcasted_iota(jnp.int32, (S, S), 0)
    col = jax.lax.broadcasted_iota(jnp.int32, (S, S), 1)
    causal = col <= row

    # ---- per-Q-head GQA attention; contexts collected, o_proj done once ----
    ctxs = []
    for hq in range(NQ):
        kv = hq // GROUPS                                   # repeat_kv mapping
        q_h = qk_bf[:, hq * DH:(hq + 1) * DH]               # [S, DH]
        k_h = qk_bf[:, (NQ + kv) * DH:(NQ + kv + 1) * DH]   # [S, DH]
        v_h = v_bf[:, kv * DH:(kv + 1) * DH]                # [S, DH]

        # q @ k^T (contract last dims; no explicit transpose)
        scores = jax.lax.dot_general(
            q_h, k_h, (((1,), (1,)), ((), ())),
            preferred_element_type=jnp.float32)             # [S, S]
        scores = jnp.where(causal, scores, NEG_INF)
        m = jnp.max(scores, axis=-1, keepdims=True)
        p = jnp.exp(scores - m)
        p = p * pl.reciprocal(jnp.sum(p, axis=-1, keepdims=True), approx=True)

        ctxs.append(jnp.dot(p.astype(jnp.bfloat16), v_h,
                            preferred_element_type=jnp.float32))

    ctx_all = jnp.concatenate(ctxs, axis=-1).astype(jnp.bfloat16)   # [S, NQ*DH]
    attn = jnp.dot(ctx_all, wo_ref[...],
                   preferred_element_type=jnp.float32)              # [S, H]

    # ---- residual ----
    h1 = x + attn

    # ---- post_attention_layernorm + MLP (fused gate‖up, SiLU, down) ----
    h2 = _rms_norm(h1, ln2_ref[...])
    h2_bf = h2.astype(jnp.bfloat16)
    gu = jnp.dot(h2_bf, wgu_ref[...],
                 preferred_element_type=jnp.float32)                # [S, 2*INTER]
    gate = gu[:, :INTER]
    up = gu[:, INTER:]
    act = gate * pl.reciprocal(1.0 + jnp.exp(-gate), approx=True)   # SiLU on EUP
    mlp = jnp.dot((act * up).astype(jnp.bfloat16), wd_ref[...],
                  preferred_element_type=jnp.float32)

    # TODO(synk): out last dim (H=32) < 128 -> masked stores; lane-dense at real H.
    out_ref[...] = h1 + mlp


# --------------------------------- wrapper -------------------------------------
def decoder_layer(x, wqkv_fused, wo_full, wgu, wd, cos_full, sin_full, ln1, ln2):
    n_in = 9
    return pl.pallas_call(
        decoder_kernel,
        out_shape=jax.ShapeDtypeStruct((S, H), jnp.float32),
        in_specs=[pl.BlockSpec(memory_space=pltpu.MemorySpace.VMEM)] * n_in,
        out_specs=pl.BlockSpec(memory_space=pltpu.MemorySpace.VMEM),
    )(x, wqkv_fused, wo_full, wgu, wd, cos_full, sin_full, ln1, ln2)


def _fold_rotate_half_cols(w, n_heads):
    # w: [H, n_heads*DH]. Returns w_rot with  h @ w_rot == rotate_half(h @ w)
    # applied per head:  first half cols = -(second half of w), second = first.
    wr = w.reshape(H, n_heads, DH)
    half = DH // 2
    wr = jnp.concatenate([-wr[..., half:], wr[..., :half]], axis=-1)
    return wr.reshape(H, n_heads * DH)


# ---------------------------- pure-JAX reference ------------------------------
def decoder_ref(x, wq, wk, wv, wo, wgu, wd, cos, sin, ln1, ln2):
    # Mirrors the PyTorch module: fused qkv split, per-head RoPE (rotate_half),
    # repeat_kv, causal SDPA, o_proj, gate/up chunk + SiLU + down.
    f32 = lambda a: a.astype(jnp.float32)
    h = _rms_norm(x, ln1)
    q = (h @ f32(wq)).reshape(S, NQ, DH)
    k = (h @ f32(wk)).reshape(S, NKV, DH)
    v = (h @ f32(wv)).reshape(S, NKV, DH)

    half = DH // 2
    def rope(t):
        rot = jnp.concatenate([-t[..., half:], t[..., :half]], axis=-1)
        return t * cos[:, None, :] + rot * sin[:, None, :]
    q, k = rope(q), rope(k)
    k = jnp.repeat(k, GROUPS, axis=1)        # repeat_kv
    v = jnp.repeat(v, GROUPS, axis=1)

    causal = jnp.tril(jnp.ones((S, S), dtype=bool))
    outs = []
    for hq in range(NQ):
        s = jnp.where(causal, (q[:, hq] @ k[:, hq].T) * SCALE, NEG_INF)
        p = jax.nn.softmax(s, axis=-1)
        outs.append(p @ v[:, hq])
    attn = jnp.concatenate(outs, axis=-1) @ f32(wo)

    h1 = x + attn
    h2 = _rms_norm(h1, ln2)
    gu = h2 @ f32(wgu)
    gate, up = gu[:, :INTER], gu[:, INTER:]
    return h1 + (jax.nn.silu(gate) * up) @ f32(wd)


# --------------------------------- main ---------------------------------------
if __name__ == "__main__":
    key = jax.random.PRNGKey(0)
    ks = jax.random.split(key, 8)

    x = jax.random.normal(ks[0], (S, H), jnp.float32)

    # Module-shaped fused weights (QKVParallelLayer / MergeParallelLayer layouts).
    wqkv_full = jax.random.normal(ks[1], (H, (NQ + 2 * NKV) * DH), jnp.float32) * 0.05
    wq_f = wqkv_full[:, :NQ * DH]                              # [H, NQ*DH]
    wk_f = wqkv_full[:, NQ * DH:(NQ + NKV) * DH]               # [H, NKV*DH]
    wv_f = wqkv_full[:, (NQ + NKV) * DH:]                      # [H, NKV*DH]

    wo_full = jax.random.normal(ks[2], (NQ * DH, H), jnp.float32) * 0.05
    wgu_full = jax.random.normal(ks[3], (H, 2 * INTER), jnp.float32) * 0.05  # gate‖up
    wd_full = jax.random.normal(ks[4], (INTER, H), jnp.float32) * 0.05

    ln1 = jnp.ones((1, H), jnp.float32) + 0.01 * jax.random.normal(ks[5], (1, H))
    ln2 = jnp.ones((1, H), jnp.float32) + 0.01 * jax.random.normal(ks[6], (1, H))

    # rotary position embeddings (llama half-split layout), f32
    inv_freq = 1.0 / (ROPE_THETA ** (jnp.arange(0, DH, 2, dtype=jnp.float32) / DH))
    pos = jnp.arange(S, dtype=jnp.float32)[:, None]
    ang = pos * inv_freq[None, :]                              # [S, DH/2]
    cos = jnp.concatenate([jnp.cos(ang), jnp.cos(ang)], axis=-1)   # [S, DH]
    sin = jnp.concatenate([jnp.sin(ang), jnp.sin(ang)], axis=-1)   # [S, DH]

    # bf16 MXU-operand weights (same quantized values used by the reference)
    bf = lambda a: a.astype(jnp.bfloat16)
    wq_b, wk_b, wv_b = bf(wq_f), bf(wk_f), bf(wv_f)
    wqr_b = _fold_rotate_half_cols(wq_b, NQ)      # negation of bf16 is exact
    wkr_b = _fold_rotate_half_cols(wk_b, NKV)
    wqkv_fused = jnp.concatenate([wq_b, wk_b, wqr_b, wkr_b, wv_b], axis=1)  # [H,112]
    wo_b, wgu_b, wd_b = bf(wo_full), bf(wgu_full), bf(wd_full)

    # cos/sin tiled across Q then K heads; 1/sqrt(DH) folded into the Q part.
    cos_full = jnp.concatenate([jnp.tile(cos, (1, NQ)) * SCALE,
                                jnp.tile(cos, (1, NKV))], axis=-1)   # [S, 48]
    sin_full = jnp.concatenate([jnp.tile(sin, (1, NQ)) * SCALE,
                                jnp.tile(sin, (1, NKV))], axis=-1)   # [S, 48]

    out = decoder_layer(x, wqkv_fused, wo_b, wgu_b, wd_b,
                        cos_full, sin_full, ln1, ln2)
    out = jax.block_until_ready(out)

    ref = decoder_ref(x, wq_b, wk_b, wv_b, wo_b, wgu_b, wd_b,
                      cos, sin, ln1, ln2)
    assert out.shape == (S, H)
    assert jnp.allclose(out, ref, rtol=2e-2, atol=5e-3), "mismatch vs reference"

    print("KERNEL_OK")
</pallas_src>

<mosaic_0001>
module attributes {stable_mosaic.version = 11 : i64} {
  func.func @decoder_kernel(%arg0: memref<8x32xf32, #tpu.memory_space<vmem>>, %arg1: memref<32x112xbf16, #tpu.memory_space<vmem>>, %arg2: memref<32x32xbf16, #tpu.memory_space<vmem>>, %arg3: memref<32x128xbf16, #tpu.memory_space<vmem>>, %arg4: memref<64x32xbf16, #tpu.memory_space<vmem>>, %arg5: memref<8x48xf32, #tpu.memory_space<vmem>>, %arg6: memref<8x48xf32, #tpu.memory_space<vmem>>, %arg7: memref<1x32xf32, #tpu.memory_space<vmem>>, %arg8: memref<1x32xf32, #tpu.memory_space<vmem>>, %arg9: memref<8x32xf32, #tpu.memory_space<vmem>>) attributes {dimension_semantics = [], scalar_prefetch = 0 : i64, scratch_operands = 0 : i64, tpu.core_type = #tpu.core_type<tc>} {
    %c0 = arith.constant 0 : index
    %c0_0 = arith.constant 0 : index
    %0 = vector.load %arg0[%c0, %c0_0] : memref<8x32xf32, #tpu.memory_space<vmem>>, vector<8x32xf32>
    %c0_1 = arith.constant 0 : index
    %c0_2 = arith.constant 0 : index
    %1 = vector.load %arg7[%c0_1, %c0_2] : memref<1x32xf32, #tpu.memory_space<vmem>>, vector<1x32xf32>
    %2 = arith.mulf %0, %0 : vector<8x32xf32>
    %cst = arith.constant dense<0.000000e+00> : vector<8xf32>
    %3 = vector.multi_reduction <add>, %2, %cst [1] : vector<8x32xf32> to vector<8xf32>
    %4 = vector.shape_cast %3 : vector<8xf32> to vector<8x1xf32>
    %cst_3 = arith.constant 3.200000e+01 : f32
    %5 = vector.broadcast %cst_3 : f32 to vector<8x1xf32>
    %6 = arith.divf %4, %5 : vector<8x1xf32>
    %cst_4 = arith.constant 9.99999997E-7 : f32
    %7 = vector.broadcast %cst_4 : f32 to vector<8x1xf32>
    %8 = arith.addf %6, %7 : vector<8x1xf32>
    %9 = math.rsqrt %8 : vector<8x1xf32>
    %10 = vector.broadcast %9 : vector<8x1xf32> to vector<8x32xf32>
    %11 = arith.mulf %0, %10 : vector<8x32xf32>
    %12 = vector.broadcast %1 : vector<1x32xf32> to vector<8x32xf32>
    %13 = arith.mulf %11, %12 : vector<8x32xf32>
    %14 = arith.truncf %13 : vector<8x32xf32> to vector<8x32xbf16>
    %c0_5 = arith.constant 0 : index
    %c0_6 = arith.constant 0 : index
    %15 = vector.load %arg1[%c0_5, %c0_6] : memref<32x112xbf16, #tpu.memory_space<vmem>>, vector<32x112xbf16>
    %cst_7 = arith.constant dense<0.000000e+00> : vector<8x112xf32>
    %16 = tpu.matmul %14, %15, %cst_7 {dimension_numbers = #tpu.dot_dimension_numbers<[1], [0], [0], [1], [0, 0, 1, 1], [], []>} : vector<8x32xbf16>, vector<32x112xbf16>, vector<8x112xf32> -> vector<8x112xf32>
    %17 = vector.extract_strided_slice %16 {offsets = [0, 0], sizes = [8, 48], strides = [1, 1]} : vector<8x112xf32> to vector<8x48xf32>
    %18 = vector.extract_strided_slice %16 {offsets = [0, 48], sizes = [8, 48], strides = [1, 1]} : vector<8x112xf32> to vector<8x48xf32>
    %19 = vector.extract_strided_slice %16 {offsets = [0, 96], sizes = [8, 16], strides = [1, 1]} : vector<8x112xf32> to vector<8x16xf32>
    %c0_8 = arith.constant 0 : index
    %c0_9 = arith.constant 0 : index
    %20 = vector.load %arg5[%c0_8, %c0_9] : memref<8x48xf32, #tpu.memory_space<vmem>>, vector<8x48xf32>
    %21 = arith.mulf %17, %20 : vector<8x48xf32>
    %c0_10 = arith.constant 0 : index
    %c0_11 = arith.constant 0 : index
    %22 = vector.load %arg6[%c0_10, %c0_11] : memref<8x48xf32, #tpu.memory_space<vmem>>, vector<8x48xf32>
    %23 = arith.mulf %18, %22 : vector<8x48xf32>
    %24 = arith.addf %21, %23 : vector<8x48xf32>
    %25 = arith.truncf %24 : vector<8x48xf32> to vector<8x48xbf16>
    %26 = arith.truncf %19 : vector<8x16xf32> to vector<8x16xbf16>
    %27 = tpu.iota {dimensions = array<i32: 0>} : vector<8x8xi32>
    %28 = tpu.iota {dimensions = array<i32: 1>} : vector<8x8xi32>
    %29 = arith.cmpi sle, %28, %27 : vector<8x8xi32>
    %30 = vector.extract_strided_slice %25 {offsets = [0, 0], sizes = [8, 8], strides = [1, 1]} : vector<8x48xbf16> to vector<8x8xbf16>
    %31 = vector.extract_strided_slice %25 {offsets = [0, 32], sizes = [8, 8], strides = [1, 1]} : vector<8x48xbf16> to vector<8x8xbf16>
    %32 = vector.extract_strided_slice %26 {offsets = [0, 0], sizes = [8, 8], strides = [1, 1]} : vector<8x16xbf16> to vector<8x8xbf16>
    %cst_12 = arith.constant dense<0.000000e+00> : vector<8x8xf32>
    %33 = tpu.matmul %30, %31, %cst_12 {dimension_numbers = #tpu.dot_dimension_numbers<[1], [1], [0], [0], [0, 0, 1, 0], [], []>} : vector<8x8xbf16>, vector<8x8xbf16>, vector<8x8xf32> -> vector<8x8xf32>
    %cst_13 = arith.constant -1.000000e+30 : f32
    %34 = vector.broadcast %cst_13 : f32 to vector<8x8xf32>
    %35 = arith.select %29, %33, %34 : vector<8x8xi1>, vector<8x8xf32>
    %cst_14 = arith.constant dense<0xFF800000> : vector<8xf32>
    %36 = vector.multi_reduction <maximumf>, %35, %cst_14 [1] : vector<8x8xf32> to vector<8xf32>
    %37 = vector.shape_cast %36 : vector<8xf32> to vector<8x1xf32>
    %38 = vector.broadcast %37 : vector<8x1xf32> to vector<8x8xf32>
    %39 = arith.subf %35, %38 : vector<8x8xf32>
    %40 = math.exp %39 : vector<8x8xf32>
    %cst_15 = arith.constant dense<0.000000e+00> : vector<8xf32>
    %41 = vector.multi_reduction <add>, %40, %cst_15 [1] : vector<8x8xf32> to vector<8xf32>
    %42 = vector.shape_cast %41 : vector<8xf32> to vector<8x1xf32>
    %43 = tpu.reciprocal %42 {approx = true} : vector<8x1xf32> -> vector<8x1xf32>
    %44 = vector.broadcast %43 : vector<8x1xf32> to vector<8x8xf32>
    %45 = arith.mulf %40, %44 : vector<8x8xf32>
    %46 = arith.truncf %45 : vector<8x8xf32> to vector<8x8xbf16>
    %cst_16 = arith.constant dense<0.000000e+00> : vector<8x8xf32>
    %47 = tpu.matmul %46, %32, %cst_16 {dimension_numbers = #tpu.dot_dimension_numbers<[1], [0], [0], [1], [0, 0, 1, 1], [], []>} : vector<8x8xbf16>, vector<8x8xbf16>, vector<8x8xf32> -> vector<8x8xf32>
    %48 = vector.extract_strided_slice %25 {offsets = [0, 8], sizes = [8, 8], strides = [1, 1]} : vector<8x48xbf16> to vector<8x8xbf16>
    %49 = vector.extract_strided_slice %25 {offsets = [0, 32], sizes = [8, 8], strides = [1, 1]} : vector<8x48xbf16> to vector<8x8xbf16>
    %50 = vector.extract_strided_slice %26 {offsets = [0, 0], sizes = [8, 8], strides = [1, 1]} : vector<8x16xbf16> to vector<8x8xbf16>
    %cst_17 = arith.constant dense<0.000000e+00> : vector<8x8xf32>
    %51 = tpu.matmul %48, %49, %cst_17 {dimension_numbers = #tpu.dot_dimension_numbers<[1], [1], [0], [0], [0, 0, 1, 0], [], []>} : vector<8x8xbf16>, vector<8x8xbf16>, vector<8x8xf32> -> vector<8x8xf32>
    %cst_18 = arith.constant -1.000000e+30 : f32
    %52 = vector.broadcast %cst_18 : f32 to vector<8x8xf32>
    %53 = arith.select %29, %51, %52 : vector<8x8xi1>, vector<8x8xf32>
    %cst_19 = arith.constant dense<0xFF800000> : vector<8xf32>
    %54 = vector.multi_reduction <maximumf>, %53, %cst_19 [1] : vector<8x8xf32> to vector<8xf32>
    %55 = vector.shape_cast %54 : vector<8xf32> to vector<8x1xf32>
    %56 = vector.broadcast %55 : vector<8x1xf32> to vector<8x8xf32>
    %57 = arith.subf %53, %56 : vector<8x8xf32>
    %58 = math.exp %57 : vector<8x8xf32>
    %cst_20 = arith.constant dense<0.000000e+00> : vector<8xf32>
    %59 = vector.multi_reduction <add>, %58, %cst_20 [1] : vector<8x8xf32> to vector<8xf32>
    %60 = vector.shape_cast %59 : vector<8xf32> to vector<8x1xf32>
    %61 = tpu.reciprocal %60 {approx = true} : vector<8x1xf32> -> vector<8x1xf32>
    %62 = vector.broadcast %61 : vector<8x1xf32> to vector<8x8xf32>
    %63 = arith.mulf %58, %62 : vector<8x8xf32>
    %64 = arith.truncf %63 : vector<8x8xf32> to vector<8x8xbf16>
    %cst_21 = arith.constant dense<0.000000e+00> : vector<8x8xf32>
    %65 = tpu.matmul %64, %50, %cst_21 {dimension_numbers = #tpu.dot_dimension_numbers<[1], [0], [0], [1], [0, 0, 1, 1], [], []>} : vector<8x8xbf16>, vector<8x8xbf16>, vector<8x8xf32> -> vector<8x8xf32>
    %66 = vector.extract_strided_slice %25 {offsets = [0, 16], sizes = [8, 8], strides = [1, 1]} : vector<8x48xbf16> to vector<8x8xbf16>
    %67 = vector.extract_strided_slice %25 {offsets = [0, 40], sizes = [8, 8], strides = [1, 1]} : vector<8x48xbf16> to vector<8x8xbf16>
    %68 = vector.extract_strided_slice %26 {offsets = [0, 8], sizes = [8, 8], strides = [1, 1]} : vector<8x16xbf16> to vector<8x8xbf16>
    %cst_22 = arith.constant dense<0.000000e+00> : vector<8x8xf32>
    %69 = tpu.matmul %66, %67, %cst_22 {dimension_numbers = #tpu.dot_dimension_numbers<[1], [1], [0], [0], [0, 0, 1, 0], [], []>} : vector<8x8xbf16>, vector<8x8xbf16>, vector<8x8xf32> -> vector<8x8xf32>
    %cst_23 = arith.constant -1.000000e+30 : f32
    %70 = vector.broadcast %cst_23 : f32 to vector<8x8xf32>
    %71 = arith.select %29, %69, %70 : vector<8x8xi1>, vector<8x8xf32>
    %cst_24 = arith.constant dense<0xFF800000> : vector<8xf32>
    %72 = vector.multi_reduction <maximumf>, %71, %cst_24 [1] : vector<8x8xf32> to vector<8xf32>
    %73 = vector.shape_cast %72 : vector<8xf32> to vector<8x1xf32>
    %74 = vector.broadcast %73 : vector<8x1xf32> to vector<8x8xf32>
    %75 = arith.subf %71, %74 : vector<8x8xf32>
    %76 = math.exp %75 : vector<8x8xf32>
    %cst_25 = arith.constant dense<0.000000e+00> : vector<8xf32>
    %77 = vector.multi_reduction <add>, %76, %cst_25 [1] : vector<8x8xf32> to vector<8xf32>
    %78 = vector.shape_cast %77 : vector<8xf32> to vector<8x1xf32>
    %79 = tpu.reciprocal %78 {approx = true} : vector<8x1xf32> -> vector<8x1xf32>
    %80 = vector.broadcast %79 : vector<8x1xf32> to vector<8x8xf32>
    %81 = arith.mulf %76, %80 : vector<8x8xf32>
    %82 = arith.truncf %81 : vector<8x8xf32> to vector<8x8xbf16>
    %cst_26 = arith.constant dense<0.000000e+00> : vector<8x8xf32>
    %83 = tpu.matmul %82, %68, %cst_26 {dimension_numbers = #tpu.dot_dimension_numbers<[1], [0], [0], [1], [0, 0, 1, 1], [], []>} : vector<8x8xbf16>, vector<8x8xbf16>, vector<8x8xf32> -> vector<8x8xf32>
    %84 = vector.extract_strided_slice %25 {offsets = [0, 24], sizes = [8, 8], strides = [1, 1]} : vector<8x48xbf16> to vector<8x8xbf16>
    %85 = vector.extract_strided_slice %25 {offsets = [0, 40], sizes = [8, 8], strides = [1, 1]} : vector<8x48xbf16> to vector<8x8xbf16>
    %86 = vector.extract_strided_slice %26 {offsets = [0, 8], sizes = [8, 8], strides = [1, 1]} : vector<8x16xbf16> to vector<8x8xbf16>
    %cst_27 = arith.constant dense<0.000000e+00> : vector<8x8xf32>
    %87 = tpu.matmul %84, %85, %cst_27 {dimension_numbers = #tpu.dot_dimension_numbers<[1], [1], [0], [0], [0, 0, 1, 0], [], []>} : vector<8x8xbf16>, vector<8x8xbf16>, vector<8x8xf32> -> vector<8x8xf32>
    %cst_28 = arith.constant -1.000000e+30 : f32
    %88 = vector.broadcast %cst_28 : f32 to vector<8x8xf32>
    %89 = arith.select %29, %87, %88 : vector<8x8xi1>, vector<8x8xf32>
    %cst_29 = arith.constant dense<0xFF800000> : vector<8xf32>
    %90 = vector.multi_reduction <maximumf>, %89, %cst_29 [1] : vector<8x8xf32> to vector<8xf32>
    %91 = vector.shape_cast %90 : vector<8xf32> to vector<8x1xf32>
    %92 = vector.broadcast %91 : vector<8x1xf32> to vector<8x8xf32>
    %93 = arith.subf %89, %92 : vector<8x8xf32>
    %94 = math.exp %93 : vector<8x8xf32>
    %cst_30 = arith.constant dense<0.000000e+00> : vector<8xf32>
    %95 = vector.multi_reduction <add>, %94, %cst_30 [1] : vector<8x8xf32> to vector<8xf32>
    %96 = vector.shape_cast %95 : vector<8xf32> to vector<8x1xf32>
    %97 = tpu.reciprocal %96 {approx = true} : vector<8x1xf32> -> vector<8x1xf32>
    %98 = vector.broadcast %97 : vector<8x1xf32> to vector<8x8xf32>
    %99 = arith.mulf %94, %98 : vector<8x8xf32>
    %100 = arith.truncf %99 : vector<8x8xf32> to vector<8x8xbf16>
    %cst_31 = arith.constant dense<0.000000e+00> : vector<8x8xf32>
    %101 = tpu.matmul %100, %86, %cst_31 {dimension_numbers = #tpu.dot_dimension_numbers<[1], [0], [0], [1], [0, 0, 1, 1], [], []>} : vector<8x8xbf16>, vector<8x8xbf16>, vector<8x8xf32> -> vector<8x8xf32>
    %102 = tpu.concatenate %47, %65, %83, %101 in 1 : vector<8x8xf32>, vector<8x8xf32>, vector<8x8xf32>, vector<8x8xf32> -> vector<8x32xf32>
    %103 = arith.truncf %102 : vector<8x32xf32> to vector<8x32xbf16>
    %c0_32 = arith.constant 0 : index
    %c0_33 = arith.constant 0 : index
    %104 = vector.load %arg2[%c0_32, %c0_33] : memref<32x32xbf16, #tpu.memory_space<vmem>>, vector<32x32xbf16>
    %cst_34 = arith.constant dense<0.000000e+00> : vector<8x32xf32>
    %105 = tpu.matmul %103, %104, %cst_34 {dimension_numbers = #tpu.dot_dimension_numbers<[1], [0], [0], [1], [0, 0, 1, 1], [], []>} : vector<8x32xbf16>, vector<32x32xbf16>, vector<8x32xf32> -> vector<8x32xf32>
    %106 = arith.addf %0, %105 : vector<8x32xf32>
    %c0_35 = arith.constant 0 : index
    %c0_36 = arith.constant 0 : index
    %107 = vector.load %arg8[%c0_35, %c0_36] : memref<1x32xf32, #tpu.memory_space<vmem>>, vector<1x32xf32>
    %108 = arith.mulf %106, %106 : vector<8x32xf32>
    %cst_37 = arith.constant dense<0.000000e+00> : vector<8xf32>
    %109 = vector.multi_reduction <add>, %108, %cst_37 [1] : vector<8x32xf32> to vector<8xf32>
    %110 = vector.shape_cast %109 : vector<8xf32> to vector<8x1xf32>
    %cst_38 = arith.constant 3.200000e+01 : f32
    %111 = vector.broadcast %cst_38 : f32 to vector<8x1xf32>
    %112 = arith.divf %110, %111 : vector<8x1xf32>
    %cst_39 = arith.constant 9.99999997E-7 : f32
    %113 = vector.broadcast %cst_39 : f32 to vector<8x1xf32>
    %114 = arith.addf %112, %113 : vector<8x1xf32>
    %115 = math.rsqrt %114 : vector<8x1xf32>
    %116 = vector.broadcast %115 : vector<8x1xf32> to vector<8x32xf32>
    %117 = arith.mulf %106, %116 : vector<8x32xf32>
    %118 = vector.broadcast %107 : vector<1x32xf32> to vector<8x32xf32>
    %119 = arith.mulf %117, %118 : vector<8x32xf32>
    %120 = arith.truncf %119 : vector<8x32xf32> to vector<8x32xbf16>
    %c0_40 = arith.constant 0 : index
    %c0_41 = arith.constant 0 : index
    %121 = vector.load %arg3[%c0_40, %c0_41] : memref<32x128xbf16, #tpu.memory_space<vmem>>, vector<32x128xbf16>
    %cst_42 = arith.constant dense<0.000000e+00> : vector<8x128xf32>
    %122 = tpu.matmul %120, %121, %cst_42 {dimension_numbers = #tpu.dot_dimension_numbers<[1], [0], [0], [1], [0, 0, 1, 1], [], []>} : vector<8x32xbf16>, vector<32x128xbf16>, vector<8x128xf32> -> vector<8x128xf32>
    %123 = vector.extract_strided_slice %122 {offsets = [0, 0], sizes = [8, 64], strides = [1, 1]} : vector<8x128xf32> to vector<8x64xf32>
    %124 = vector.extract_strided_slice %122 {offsets = [0, 64], sizes = [8, 64], strides = [1, 1]} : vector<8x128xf32> to vector<8x64xf32>
    %cst_43 = arith.constant 0.000000e+00 : f32
    %125 = vector.broadcast %cst_43 : f32 to vector<8x64xf32>
    %126 = arith.subf %125, %123 : vector<8x64xf32>
    %127 = math.exp %126 : vector<8x64xf32>
    %cst_44 = arith.constant 1.000000e+00 : f32
    %128 = vector.broadcast %cst_44 : f32 to vector<8x64xf32>
    %129 = arith.addf %128, %127 : vector<8x64xf32>
    %130 = tpu.reciprocal %129 {approx = true} : vector<8x64xf32> -> vector<8x64xf32>
    %131 = arith.mulf %123, %130 : vector<8x64xf32>
    %132 = arith.mulf %131, %124 : vector<8x64xf32>
    %133 = arith.truncf %132 : vector<8x64xf32> to vector<8x64xbf16>
    %c0_45 = arith.constant 0 : index
    %c0_46 = arith.constant 0 : index
    %134 = vector.load %arg4[%c0_45, %c0_46] : memref<64x32xbf16, #tpu.memory_space<vmem>>, vector<64x32xbf16>
    %cst_47 = arith.constant dense<0.000000e+00> : vector<8x32xf32>
    %135 = tpu.matmul %133, %134, %cst_47 {dimension_numbers = #tpu.dot_dimension_numbers<[1], [0], [0], [1], [0, 0, 1, 1], [], []>} : vector<8x64xbf16>, vector<64x32xbf16>, vector<8x32xf32> -> vector<8x32xf32>
    %136 = arith.addf %106, %135 : vector<8x32xf32>
    %c0_48 = arith.constant 0 : index
    %c0_49 = arith.constant 0 : index
    %137 = vector.load %arg9[%c0_48, %c0_49] : memref<8x32xf32, #tpu.memory_space<vmem>>, vector<8x32xf32>
    tpu.vector_store %arg9[%c0_48, %c0_49], %136 {strides = array<i32>} : memref<8x32xf32, #tpu.memory_space<vmem>>, vector<8x32xf32>,
    return
  }
}

</mosaic_0001>

<llo_original>
// kernel: tpu_custom_call.1
$region0: #{tpu_custom_call.1}
  #allocation0 [shape = 'u32[]', space=smem, size = 0x4, offset = 0x4, fixed_abs, tag = 'smem constant byte address 0x4 - core index']
  #allocation1 [shape = 'u32[144,128]{1,0:T(1,128)}', space=vmem, size = 0x12000, scoped, tag = 'internal scratch']
  %s0 = inlined_call_operand.hbm [shape: f32[8,32], index: 0, kind: input, shape index: {}]
  %s1 = inlined_call_operand.vmem [shape: bf16[32,112], index: 1, kind: input, shape index: {}]
  %s2 = inlined_call_operand.vmem [shape: bf16[32,32], index: 2, kind: input, shape index: {}]
  %s3 = inlined_call_operand.vmem [shape: bf16[32,128], index: 3, kind: input, shape index: {}]
  %s4 = inlined_call_operand.vmem [shape: bf16[64,32], index: 4, kind: input, shape index: {}]
  %s5 = inlined_call_operand.vmem [shape: f32[8,48], index: 5, kind: input, shape index: {}]
  %s6 = inlined_call_operand.hbm [shape: f32[8,48], index: 6, kind: input, shape index: {}]
  %s7 = inlined_call_operand.vmem [shape: f32[1,32], index: 7, kind: input, shape index: {}]
  %s8 = inlined_call_operand.vmem [shape: f32[1,32], index: 8, kind: input, shape index: {}]
  %s9 = inlined_call_operand.hbm [shape: f32[8,32], index: 9, kind: output, shape index: {}]
  %s10 = sld [smem:[#allocation0]]
  $region54: #{tpu_custom_call.1} parent=0
    _
  %s12 = ssub.s32 1, %s10
  %s13 = scalar_select 0, %s12, %s10
  $region1: #{tpu_custom_call.1} parent=0
    #allocation2 [shape = 'u8[4096]{0}', space=vmem, size = 0x1000, scoped, tag = 'input window, operand 0, single buffered']
    #allocation3 [shape = 's32[1]{0}', space=sflag, size = 0x4, scoped, tag = 'scoped memory for tpu_custom_call.1']
    #allocation4 [shape = 's32[1]{0}', space=sflag, size = 0x4, scoped, tag = 'scoped memory for tpu_custom_call.1']
    #allocation5 [shape = 'u8[4096]{0}', space=vmem, size = 0x1000, scoped, tag = 'input window, operand 6, single buffered']
    #allocation6 [shape = 's32[1]{0}', space=sflag, size = 0x4, scoped, tag = 'scoped memory for tpu_custom_call.1']
    #allocation7 [shape = 'u8[4096]{0}', space=vmem, size = 0x1000, scoped, tag = 'output window, operand 0, single buffered']
    %14 = vsyncpa [#allocation3], 0
    %15 = vsyncpa [#allocation6], 0
    %16 = vsyncpa [#allocation4], 0
    // Predicated region
    $region2: #{tpu_custom_call.1} parent=1 // pred_check
      _
    $region3: #{tpu_custom_call.1} parent=1 // pred_check_branch
      %18 = sbr.rel (0) target = $region5
    $region4: #{tpu_custom_call.1} parent=1 // pred_region
      %s20 = ssub.s32 128, 128
      %21 = vsyncadd [#allocation3], %s20
      %s23 = sshll.u32 [#allocation2], 4
      %s24 = int_to_ptr.vmem [resolvable:$true] %s23
      %26 = dma.hbm_to_vmem [thread:$0]  %s0, 128, %s24, [#allocation3]
    $region5: #{tpu_custom_call.1} parent=1 // pred_fallthru
      _
    // Predicated region
    $region6: #{tpu_custom_call.1} parent=1 // pred_check
      _
    $region7: #{tpu_custom_call.1} parent=1 // pred_check_branch
      %28 = sbr.rel (0) target = $region9
    $region8: #{tpu_custom_call.1} parent=1 // pred_region
      _
    $region9: #{tpu_custom_call.1} parent=1 // pred_fallthru
      _
    // Predicated region
    $region10: #{tpu_custom_call.1} parent=1 // pred_check
      _
    $region11: #{tpu_custom_call.1} parent=1 // pred_check_branch
      %30 = sbr.rel (0) target = $region13
    $region12: #{tpu_custom_call.1} parent=1 // pred_region
      _
    $region13: #{tpu_custom_call.1} parent=1 // pred_fallthru
      _
    // Predicated region
    $region14: #{tpu_custom_call.1} parent=1 // pred_check
      _
    $region15: #{tpu_custom_call.1} parent=1 // pred_check_branch
      %32 = sbr.rel (0) target = $region17
    $region16: #{tpu_custom_call.1} parent=1 // pred_region
      _
    $region17: #{tpu_custom_call.1} parent=1 // pred_fallthru
      _
    // Predicated region
    $region18: #{tpu_custom_call.1} parent=1 // pred_check
      _
    $region19: #{tpu_custom_call.1} parent=1 // pred_check_branch
      %34 = sbr.rel (0) target = $region21
    $region20: #{tpu_custom_call.1} parent=1 // pred_region
      _
    $region21: #{tpu_custom_call.1} parent=1 // pred_fallthru
      _
    // Predicated region
    $region22: #{tpu_custom_call.1} parent=1 // pred_check
      _
    $region23: #{tpu_custom_call.1} parent=1 // pred_check_branch
      %36 = sbr.rel (0) target = $region25
    $region24: #{tpu_custom_call.1} parent=1 // pred_region
      _
    $region25: #{tpu_custom_call.1} parent=1 // pred_fallthru
      _
    // Predicated region
    $region26: #{tpu_custom_call.1} parent=1 // pred_check
      _
    $region27: #{tpu_custom_call.1} parent=1 // pred_check_branch
      %38 = sbr.rel (0) target = $region29
    $region28: #{tpu_custom_call.1} parent=1 // pred_region
      %s40 = ssub.s32 128, 128
      %41 = vsyncadd [#allocation6], %s40
      %s43 = sshll.u32 [#allocation5], 4
      %s44 = int_to_ptr.vmem [resolvable:$true] %s43
      %46 = dma.hbm_to_vmem [thread:$0]  %s6, 128, %s44, [#allocation6]
    $region29: #{tpu_custom_call.1} parent=1 // pred_fallthru
      _
    // Predicated region
    $region30: #{tpu_custom_call.1} parent=1 // pred_check
      _
    $region31: #{tpu_custom_call.1} parent=1 // pred_check_branch
      %48 = sbr.rel (0) target = $region33
    $region32: #{tpu_custom_call.1} parent=1 // pred_region
      _
    $region33: #{tpu_custom_call.1} parent=1 // pred_fallthru
      _
    // Predicated region
    $region34: #{tpu_custom_call.1} parent=1 // pred_check
      _
    $region35: #{tpu_custom_call.1} parent=1 // pred_check_branch
      %50 = sbr.rel (0) target = $region37
    $region36: #{tpu_custom_call.1} parent=1 // pred_region
      _
    $region37: #{tpu_custom_call.1} parent=1 // pred_fallthru
      _
    // Predicated region
    $region38: #{tpu_custom_call.1} parent=1 // pred_check
      _
    $region39: #{tpu_custom_call.1} parent=1 // pred_check_branch
      %52 = sbr.rel (0) target = $region41
    $region40: #{tpu_custom_call.1} parent=1 // pred_region
      %53 = dma.done [#allocation3], 128
    $region41: #{tpu_custom_call.1} parent=1 // pred_fallthru
      _
    // Predicated region
    $region42: #{tpu_custom_call.1} parent=1 // pred_check
      _
    $region43: #{tpu_custom_call.1} parent=1 // pred_check_branch
      %55 = sbr.rel (0) target = $region45
    $region44: #{tpu_custom_call.1} parent=1 // pred_region
      %56 = dma.done [#allocation6], 128
    $region45: #{tpu_custom_call.1} parent=1 // pred_fallthru
      _
    %v58 = vld [vmem:[#allocation2] sm:$0xff]
    %v59 = vld [vmem:[%s7] sm:$0x1]
    %v60 = vmul.f32 %v58, %v58
    %vm61 = vcmask 261120
    %v62 = vsel %vm61, %v60, 0.0
    %63 = vadd.xlane.f32.xlu0 %v62
    %v64 = vpop.xlane.xlu0 %63
    %v65 = vrcp.pop 32.0
    %v66 = vmul.f32 %v64, %v65
    %v67 = vadd.f32 %v66, 1e-06
    %v68 = vrsqrt.pop %v67
    %v69 = vmul.f32 %v58, %v68
    %v71 = vlaneseq
    %v72 = vshrl.u32 %v71, 7
    %v73 = vsub.s32 0, %v72
    %v74 = vrot.slane %v59, %v73
    %v76 = vmul.f32 %v69, %v74
    %v77 = vpack.c.bf16 %v76, %v76
    %v78 = vld [vmem:[%s1] sm:$0xf]
    %v79 = vld [vmem:[%s1 + $0x4] sm:$0xf]
    %v80 = vld [vmem:[%s1 + $0x8] sm:$0xf]
    %v81 = vld [vmem:[%s1 + $0xc] sm:$0xf]
    %v86 = vunpack.c.l.b16 %v78
    %v87 = vunpack.c.l.b16 %v79
    %v88 = vunpack.c.l.b16 %v80
    %v89 = vunpack.c.l.b16 %v81
    %v90 = vpack.c.b16 %v87, %v86
    %v91 = vpack.c.b16 %v89, %v88
    %v95 = vsel %vm61, %v77, 0
    %97 = vmatprep.subr.bf16.mxu0 0
    %98 = vmatpush1.bf16.msra.mxu0 0
    %99 = vmatprep.subr.bf16.mxu0 0
    %100 = vmatpush1.bf16.msra.mxu0 0
    %101 = vmatprep.subr.bf16.mxu0 0
    %102 = vmatpush1.bf16.msra.mxu0 0
    %103 = vmatprep.subr.bf16.mxu0 0
    %104 = vmatpush1.bf16.msra.mxu0 0
    %105 = vmatprep.subr.bf16.mxu0 0
    %106 = vmatpush1.bf16.msra.mxu0 0
    %107 = vmatprep.subr.bf16.mxu0 0
    %108 = vmatpush1.bf16.msra.mxu0 0
    %109 = vmatprep.subr.bf16.mxu0 0
    %110 = vmatpush1.bf16.msra.mxu0 %v91
    %111 = vmatprep.subr.bf16.mxu0 0
    %112 = vmatpush1.bf16.msra.mxu0 %v90
    %113 = vmatprep.subr.bf16.mxu0 0
    %114 = vmatpush2.bf16.msra.mxu0 0
    %115 = vmatprep.subr.bf16.mxu0 0
    %116 = vmatpush2.bf16.msra.mxu0 0
    %117 = vmatprep.subr.bf16.mxu0 0
    %118 = vmatpush2.bf16.msra.mxu0 0
    %119 = vmatprep.subr.bf16.mxu0 0
    %120 = vmatpush2.bf16.msra.mxu0 0
    %121 = vmatprep.subr.bf16.mxu0 0
    %122 = vmatpush2.bf16.msra.mxu0 0
    %123 = vmatprep.subr.bf16.mxu0 0
    %124 = vmatpush2.bf16.msra.mxu0 0
    %125 = vmatprep.subr.bf16.mxu0 0
    %126 = vmatpush2.bf16.msra.mxu0 0
    %127 = vmatprep.subr.bf16.mxu0 0
    %128 = vmatpush2.bf16.msra.mxu0 0
    %129 = vmatprep.mubr.bf16.mxu0 0
    %130 = vmatmul.mubr.bf16.gmra.mxu0 %v95
    %v131 = vpop.f32.mrf.mxu0
    %v132 = vadd.f32 0.0, %v131
    %v133 = vpop.f32.mrf.mxu0
    %v134 = vpop.f32.mrf.mxu0
    %v135 = vpop.f32.mrf.mxu0
    %136 = vdwg.mxu0
    %v137 = vld [vmem:[%s5] sm:$0xff]
    %v138 = vmul.f32 %v132, %v137
    %v139 = vld [vmem:[#allocation5] sm:$0xff]
    %141 = vrot.lane.b32.xlu0 %v139, 48
    %v142 = vpop.permute.xlu0 %141
    %v144 = vmul.f32 %v132, %v142
    %146 = vrot.lane.b32.xlu0 %v144, 80
    %v147 = vpop.permute.xlu0 %146
    %v149 = vadd.f32 %v138, %v147
    %v150 = vpack.c.bf16 %v149, %v149
    %v151 = vpack.c.bf16 %v132, %v132
    %v152 = vlaneseq
    %v153 = vshrl.u32 %v152, 7
    %v154 = vlaneseq
    %v155 = vand.u32 %v154, 127
    %vm156 = vcmp.le.s32.totalorder %v155, %v153
    %158 = vrot.lane.b32.xlu0 %v150, 96
    %v159 = vpop.permute.xlu0 %158
    %vm160 = vcmask 64512
    %v162 = vsel %vm160, %v150, 0
    %v165 = vsel %vm160, %v159, 0
    %167 = vmatprep.subr.bf16.mxu0 0
    %168 = vmatpush1.bf16.xpose.msra.mxu0 0
    %169 = vmatprep.subr.bf16.mxu0 0
    %170 = vmatpush1.bf16.xpose.msra.mxu0 0
    %171 = vmatprep.subr.bf16.mxu0 0
    %172 = vmatpush1.bf16.xpose.msra.mxu0 0
    %173 = vmatprep.subr.bf16.mxu0 0
    %174 = vmatpush1.bf16.xpose.msra.mxu0 0
    %175 = vmatprep.subr.bf16.mxu0 0
    %176 = vmatpush1.bf16.xpose.msra.mxu0 0
    %177 = vmatprep.subr.bf16.mxu0 0
    %178 = vmatpush1.bf16.xpose.msra.mxu0 0
    %179 = vmatprep.subr.bf16.mxu0 0
    %180 = vmatpush1.bf16.xpose.msra.mxu0 0
    %181 = vmatprep.subr.bf16.mxu0 0
    %182 = vmatpush1.bf16.xpose.msra.mxu0 %v165
    %183 = vmatprep.subr.bf16.mxu0 0
    %184 = vmatpush2.bf16.xpose.msra.mxu0 0
    %185 = vmatprep.subr.bf16.mxu0 0
    %186 = vmatpush2.bf16.xpose.msra.mxu0 0
    %187 = vmatprep.subr.bf16.mxu0 0
    %188 = vmatpush2.bf16.xpose.msra.mxu0 0
    %189 = vmatprep.subr.bf16.mxu0 0
    %190 = vmatpush2.bf16.xpose.msra.mxu0 0
    %191 = vmatprep.subr.bf16.mxu0 0
    %192 = vmatpush2.bf16.xpose.msra.mxu0 0
    %193 = vmatprep.subr.bf16.mxu0 0
    %194 = vmatpush2.bf16.xpose.msra.mxu0 0
    %195 = vmatprep.subr.bf16.mxu0 0
    %196 = vmatpush2.bf16.xpose.msra.mxu0 0
    %197 = vmatprep.subr.bf16.mxu0 0
    %198 = vmatpush2.bf16.xpose.msra.mxu0 0
    %199 = vmatprep.mubr.bf16.mxu0 0
    %200 = vmatmul.mubr.bf16.gmra.mxu0 %v162
    %v201 = vpop.f32.mrf.mxu0
    %v202 = vadd.f32 0.0, %v201
    %v203 = vpop.f32.mrf.mxu0
    %v204 = vpop.f32.mrf.mxu0
    %v205 = vpop.f32.mrf.mxu0
    %206 = vdwg.mxu0
    %v207 = vsel %vm156, %v202, -1e+30
    %v208 = vsel %vm160, %v207, -inf
    %209 = vmax.xlane.f32.xlu0 %v208
    %v210 = vpop.xlane.xlu0 %209
    %v211 = vsub.f32 %v207, %v210
    %v212 = vmul.f32 %v211, 1.442695
    %v213 = vpow.pop %v212
    %v214 = vsel %vm160, %v213, 0.0
    %215 = vadd.xlane.f32.xlu0 %v214
    %v216 = vpop.xlane.xlu0 %215
    %v217 = vrcp.pop %v216
    %v218 = vmul.f32 %v213, %v217
    %v219 = vpack.c.bf16 %v218, %v218
    %221 = vrot.lane.b32.xlu0 %v151, 32
    %v222 = vpop.permute.xlu0 %221
    %v224 = vsel %vm160, %v219, 0
    %vm226 = vcmask 1043456
    %v228 = vsel %vm226, %v222, 0
    %230 = vmatprep.subr.bf16.mxu0 0
    %231 = vmatpush1.bf16.msra.mxu0 0
    %232 = vmatprep.subr.bf16.mxu0 0
    %233 = vmatpush1.bf16.msra.mxu0 0
    %234 = vmatprep.subr.bf16.mxu0 0
    %235 = vmatpush1.bf16.msra.mxu0 0
    %236 = vmatprep.subr.bf16.mxu0 0
    %237 = vmatpush1.bf16.msra.mxu0 0
    %238 = vmatprep.subr.bf16.mxu0 0
    %239 = vmatpush1.bf16.msra.mxu0 0
    %240 = vmatprep.subr.bf16.mxu0 0
    %241 = vmatpush1.bf16.msra.mxu0 0
    %242 = vmatprep.subr.bf16.mxu0 0
    %243 = vmatpush1.bf16.msra.mxu0 0
    %244 = vmatprep.subr.bf16.mxu0 0
    %245 = vmatpush1.bf16.msra.mxu0 %v228
    %246 = vmatprep.subr.bf16.mxu0 0
    %247 = vmatpush2.bf16.msra.mxu0 0
    %248 = vmatprep.subr.bf16.mxu0 0
    %249 = vmatpush2.bf16.msra.mxu0 0
    %250 = vmatprep.subr.bf16.mxu0 0
    %251 = vmatpush2.bf16.msra.mxu0 0
    %252 = vmatprep.subr.bf16.mxu0 0
    %253 = vmatpush2.bf16.msra.mxu0 0
    %254 = vmatprep.subr.bf16.mxu0 0
    %255 = vmatpush2.bf16.msra.mxu0 0
    %256 = vmatprep.subr.bf16.mxu0 0
    %257 = vmatpush2.bf16.msra.mxu0 0
    %258 = vmatprep.subr.bf16.mxu0 0
    %259 = vmatpush2.bf16.msra.mxu0 0
    %260 = vmatprep.subr.bf16.mxu0 0
    %261 = vmatpush2.bf16.msra.mxu0 0
    %262 = vmatprep.mubr.bf16.mxu0 0
    %263 = vmatmul.mubr.bf16.gmra.mxu0 %v224
    %v264 = vpop.f32.mrf.mxu0
    %v265 = vadd.f32 0.0, %v264
    %v266 = vpop.f32.mrf.mxu0
    %v267 = vpop.f32.mrf.mxu0
    %v268 = vpop.f32.mrf.mxu0
    %269 = vdwg.mxu0
    %270 = vrot.lane.b32.xlu0 %v150, 120
    %v271 = vpop.permute.xlu0 %270
    %v273 = vsel %vm160, %v271, 0
    %275 = vmatprep.subr.bf16.mxu0 0
    %276 = vmatpush1.bf16.xpose.msra.mxu0 0
    %277 = vmatprep.subr.bf16.mxu0 0
    %278 = vmatpush1.bf16.xpose.msra.mxu0 0
    %279 = vmatprep.subr.bf16.mxu0 0
    %280 = vmatpush1.bf16.xpose.msra.mxu0 0
    %281 = vmatprep.subr.bf16.mxu0 0
    %282 = vmatpush1.bf16.xpose.msra.mxu0 0
    %283 = vmatprep.subr.bf16.mxu0 0
    %284 = vmatpush1.bf16.xpose.msra.mxu0 0
    %285 = vmatprep.subr.bf16.mxu0 0
    %286 = vmatpush1.bf16.xpose.msra.mxu0 0
    %287 = vmatprep.subr.bf16.mxu0 0
    %288 = vmatpush1.bf16.xpose.msra.mxu0 0
    %289 = vmatprep.subr.bf16.mxu0 0
    %290 = vmatpush1.bf16.xpose.msra.mxu0 %v165
    %291 = vmatprep.subr.bf16.mxu0 0
    %292 = vmatpush2.bf16.xpose.msra.mxu0 0
    %293 = vmatprep.subr.bf16.mxu0 0
    %294 = vmatpush2.bf16.xpose.msra.mxu0 0
    %295 = vmatprep.subr.bf16.mxu0 0
    %296 = vmatpush2.bf16.xpose.msra.mxu0 0
    %297 = vmatprep.subr.bf16.mxu0 0
    %298 = vmatpush2.bf16.xpose.msra.mxu0 0
    %299 = vmatprep.subr.bf16.mxu0 0
    %300 = vmatpush2.bf16.xpose.msra.mxu0 0
    %301 = vmatprep.subr.bf16.mxu0 0
    %302 = vmatpush2.bf16.xpose.msra.mxu0 0
    %303 = vmatprep.subr.bf16.mxu0 0
    %304 = vmatpush2.bf16.xpose.msra.mxu0 0
    %305 = vmatprep.subr.bf16.mxu0 0
    %306 = vmatpush2.bf16.xpose.msra.mxu0 0
    %307 = vmatprep.mubr.bf16.mxu0 0
    %308 = vmatmul.mubr.bf16.gmra.mxu0 %v273
    %v309 = vpop.f32.mrf.mxu0
    %v310 = vadd.f32 0.0, %v309
    %v311 = vpop.f32.mrf.mxu0
    %v312 = vpop.f32.mrf.mxu0
    %v313 = vpop.f32.mrf.mxu0
    %314 = vdwg.mxu0
    %v315 = vsel %vm156, %v310, -1e+30
    %v316 = vsel %vm160, %v315, -inf
    %317 = vmax.xlane.f32.xlu0 %v316
    %v318 = vpop.xlane.xlu0 %317
    %v319 = vsub.f32 %v315, %v318
    %v320 = vmul.f32 %v319, 1.442695
    %v321 = vpow.pop %v320
    %v322 = vsel %vm160, %v321, 0.0
    %323 = vadd.xlane.f32.xlu0 %v322
    %v324 = vpop.xlane.xlu0 %323
    %v325 = vrcp.pop %v324
    %v326 = vmul.f32 %v321, %v325
    %v327 = vpack.c.bf16 %v326, %v326
    %v329 = vsel %vm160, %v327, 0
    %331 = vmatprep.subr.bf16.mxu0 0
    %332 = vmatpush1.bf16.msra.mxu0 0
    %333 = vmatprep.subr.bf16.mxu0 0
    %334 = vmatpush1.bf16.msra.mxu0 0
    %335 = vmatprep.subr.bf16.mxu0 0
    %336 = vmatpush1.bf16.msra.mxu0 0
    %337 = vmatprep.subr.bf16.mxu0 0
    %338 = vmatpush1.bf16.msra.mxu0 0
    %339 = vmatprep.subr.bf16.mxu0 0
    %340 = vmatpush1.bf16.msra.mxu0 0
    %341 = vmatprep.subr.bf16.mxu0 0
    %342 = vmatpush1.bf16.msra.mxu0 0
    %343 = vmatprep.subr.bf16.mxu0 0
    %344 = vmatpush1.bf16.msra.mxu0 0
    %345 = vmatprep.subr.bf16.mxu0 0
    %346 = vmatpush1.bf16.msra.mxu0 %v228
    %347 = vmatprep.subr.bf16.mxu0 0
    %348 = vmatpush2.bf16.msra.mxu0 0
    %349 = vmatprep.subr.bf16.mxu0 0
    %350 = vmatpush2.bf16.msra.mxu0 0
    %351 = vmatprep.subr.bf16.mxu0 0
    %352 = vmatpush2.bf16.msra.mxu0 0
    %353 = vmatprep.subr.bf16.mxu0 0
    %354 = vmatpush2.bf16.msra.mxu0 0
    %355 = vmatprep.subr.bf16.mxu0 0
    %356 = vmatpush2.bf16.msra.mxu0 0
    %357 = vmatprep.subr.bf16.mxu0 0
    %358 = vmatpush2.bf16.msra.mxu0 0
    %359 = vmatprep.subr.bf16.mxu0 0
    %360 = vmatpush2.bf16.msra.mxu0 0
    %361 = vmatprep.subr.bf16.mxu0 0
    %362 = vmatpush2.bf16.msra.mxu0 0
    %363 = vmatprep.mubr.bf16.mxu0 0
    %364 = vmatmul.mubr.bf16.gmra.mxu0 %v329
    %v365 = vpop.f32.mrf.mxu0
    %v366 = vadd.f32 0.0, %v365
    %v367 = vpop.f32.mrf.mxu0
    %v368 = vpop.f32.mrf.mxu0
    %v369 = vpop.f32.mrf.mxu0
    %370 = vdwg.mxu0
    %371 = vrot.lane.b32.xlu0 %v150, 112
    %v372 = vpop.permute.xlu0 %371
    %373 = vrot.lane.b32.xlu0 %v150, 88
    %v374 = vpop.permute.xlu0 %373
    %v376 = vsel %vm160, %v372, 0
    %v379 = vsel %vm160, %v374, 0
    %381 = vmatprep.subr.bf16.mxu0 0
    %382 = vmatpush1.bf16.xpose.msra.mxu0 0
    %383 = vmatprep.subr.bf16.mxu0 0
    %384 = vmatpush1.bf16.xpose.msra.mxu0 0
    %385 = vmatprep.subr.bf16.mxu0 0
    %386 = vmatpush1.bf16.xpose.msra.mxu0 0
    %387 = vmatprep.subr.bf16.mxu0 0
    %388 = vmatpush1.bf16.xpose.msra.mxu0 0
    %389 = vmatprep.subr.bf16.mxu0 0
    %390 = vmatpush1.bf16.xpose.msra.mxu0 0
    %391 = vmatprep.subr.bf16.mxu0 0
    %392 = vmatpush1.bf16.xpose.msra.mxu0 0
    %393 = vmatprep.subr.bf16.mxu0 0
    %394 = vmatpush1.bf16.xpose.msra.mxu0 0
    %395 = vmatprep.subr.bf16.mxu0 0
    %396 = vmatpush1.bf16.xpose.msra.mxu0 %v379
    %397 = vmatprep.subr.bf16.mxu0 0
    %398 = vmatpush2.bf16.xpose.msra.mxu0 0
    %399 = vmatprep.subr.bf16.mxu0 0
    %400 = vmatpush2.bf16.xpose.msra.mxu0 0
    %401 = vmatprep.subr.bf16.mxu0 0
    %402 = vmatpush2.bf16.xpose.msra.mxu0 0
    %403 = vmatprep.subr.bf16.mxu0 0
    %404 = vmatpush2.bf16.xpose.msra.mxu0 0
    %405 = vmatprep.subr.bf16.mxu0 0
    %406 = vmatpush2.bf16.xpose.msra.mxu0 0
    %407 = vmatprep.subr.bf16.mxu0 0
    %408 = vmatpush2.bf16.xpose.msra.mxu0 0
    %409 = vmatprep.subr.bf16.mxu0 0
    %410 = vmatpush2.bf16.xpose.msra.mxu0 0
    %411 = vmatprep.subr.bf16.mxu0 0
    %412 = vmatpush2.bf16.xpose.msra.mxu0 0
    %413 = vmatprep.mubr.bf16.mxu0 0
    %414 = vmatmul.mubr.bf16.gmra.mxu0 %v376
    %v415 = vpop.f32.mrf.mxu0
    %v416 = vadd.f32 0.0, %v415
    %v417 = vpop.f32.mrf.mxu0
    %v418 = vpop.f32.mrf.mxu0
    %v419 = vpop.f32.mrf.mxu0
    %420 = vdwg.mxu0
    %v421 = vsel %vm156, %v416, -1e+30
    %v422 = vsel %vm160, %v421, -inf
    %423 = vmax.xlane.f32.xlu0 %v422
    %v424 = vpop.xlane.xlu0 %423
    %v425 = vsub.f32 %v421, %v424
    %v426 = vmul.f32 %v425, 1.442695
    %v427 = vpow.pop %v426
    %v428 = vsel %vm160, %v427, 0.0
    %429 = vadd.xlane.f32.xlu0 %v428
    %v430 = vpop.xlane.xlu0 %429
    %v431 = vrcp.pop %v430
    %v432 = vmul.f32 %v427, %v431
    %v433 = vpack.c.bf16 %v432, %v432
    %434 = vrot.lane.b32.xlu0 %v151, 24
    %v435 = vpop.permute.xlu0 %434
    %v437 = vsel %vm160, %v433, 0
    %v440 = vsel %vm226, %v435, 0
    %442 = vmatprep.subr.bf16.mxu0 0
    %443 = vmatpush1.bf16.msra.mxu0 0
    %444 = vmatprep.subr.bf16.mxu0 0
    %445 = vmatpush1.bf16.msra.mxu0 0
    %446 = vmatprep.subr.bf16.mxu0 0
    %447 = vmatpush1.bf16.msra.mxu0 0
    %448 = vmatprep.subr.bf16.mxu0 0
    %449 = vmatpush1.bf16.msra.mxu0 0
    %450 = vmatprep.subr.bf16.mxu0 0
    %451 = vmatpush1.bf16.msra.mxu0 0
    %452 = vmatprep.subr.bf16.mxu0 0
    %453 = vmatpush1.bf16.msra.mxu0 0
    %454 = vmatprep.subr.bf16.mxu0 0
    %455 = vmatpush1.bf16.msra.mxu0 0
    %456 = vmatprep.subr.bf16.mxu0 0
    %457 = vmatpush1.bf16.msra.mxu0 %v440
    %458 = vmatprep.subr.bf16.mxu0 0
    %459 = vmatpush2.bf16.msra.mxu0 0
    %460 = vmatprep.subr.bf16.mxu0 0
    %461 = vmatpush2.bf16.msra.mxu0 0
    %462 = vmatprep.subr.bf16.mxu0 0
    %463 = vmatpush2.bf16.msra.mxu0 0
    %464 = vmatprep.subr.bf16.mxu0 0
    %465 = vmatpush2.bf16.msra.mxu0 0
    %466 = vmatprep.subr.bf16.mxu0 0
    %467 = vmatpush2.bf16.msra.mxu0 0
    %468 = vmatprep.subr.bf16.mxu0 0
    %469 = vmatpush2.bf16.msra.mxu0 0
    %470 = vmatprep.subr.bf16.mxu0 0
    %471 = vmatpush2.bf16.msra.mxu0 0
    %472 = vmatprep.subr.bf16.mxu0 0
    %473 = vmatpush2.bf16.msra.mxu0 0
    %474 = vmatprep.mubr.bf16.mxu0 0
    %475 = vmatmul.mubr.bf16.gmra.mxu0 %v437
    %v476 = vpop.f32.mrf.mxu0
    %v477 = vadd.f32 0.0, %v476
    %v478 = vpop.f32.mrf.mxu0
    %v479 = vpop.f32.mrf.mxu0
    %v480 = vpop.f32.mrf.mxu0
    %481 = vdwg.mxu0
    %482 = vrot.lane.b32.xlu0 %v150, 104
    %v483 = vpop.permute.xlu0 %482
    %v485 = vsel %vm160, %v483, 0
    %487 = vmatprep.subr.bf16.mxu0 0
    %488 = vmatpush1.bf16.xpose.msra.mxu0 0
    %489 = vmatprep.subr.bf16.mxu0 0
    %490 = vmatpush1.bf16.xpose.msra.mxu0 0
    %491 = vmatprep.subr.bf16.mxu0 0
    %492 = vmatpush1.bf16.xpose.msra.mxu0 0
    %493 = vmatprep.subr.bf16.mxu0 0
    %494 = vmatpush1.bf16.xpose.msra.mxu0 0
    %495 = vmatprep.subr.bf16.mxu0 0
    %496 = vmatpush1.bf16.xpose.msra.mxu0 0
    %497 = vmatprep.subr.bf16.mxu0 0
    %498 = vmatpush1.bf16.xpose.msra.mxu0 0
    %499 = vmatprep.subr.bf16.mxu0 0
    %500 = vmatpush1.bf16.xpose.msra.mxu0 0
    %501 = vmatprep.subr.bf16.mxu0 0
    %502 = vmatpush1.bf16.xpose.msra.mxu0 %v379
    %503 = vmatprep.subr.bf16.mxu0 0
    %504 = vmatpush2.bf16.xpose.msra.mxu0 0
    %505 = vmatprep.subr.bf16.mxu0 0
    %506 = vmatpush2.bf16.xpose.msra.mxu0 0
    %507 = vmatprep.subr.bf16.mxu0 0
    %508 = vmatpush2.bf16.xpose.msra.mxu0 0
    %509 = vmatprep.subr.bf16.mxu0 0
    %510 = vmatpush2.bf16.xpose.msra.mxu0 0
    %511 = vmatprep.subr.bf16.mxu0 0
    %512 = vmatpush2.bf16.xpose.msra.mxu0 0
    %513 = vmatprep.subr.bf16.mxu0 0
    %514 = vmatpush2.bf16.xpose.msra.mxu0 0
    %515 = vmatprep.subr.bf16.mxu0 0
    %516 = vmatpush2.bf16.xpose.msra.mxu0 0
    %517 = vmatprep.subr.bf16.mxu0 0
    %518 = vmatpush2.bf16.xpose.msra.mxu0 0
    %519 = vmatprep.mubr.bf16.mxu0 0
    %520 = vmatmul.mubr.bf16.gmra.mxu0 %v485
    %v521 = vpop.f32.mrf.mxu0
    %v522 = vadd.f32 0.0, %v521
    %v523 = vpop.f32.mrf.mxu0
    %v524 = vpop.f32.mrf.mxu0
    %v525 = vpop.f32.mrf.mxu0
    %526 = vdwg.mxu0
    %v527 = vsel %vm156, %v522, -1e+30
    %v528 = vsel %vm160, %v527, -inf
    %529 = vmax.xlane.f32.xlu0 %v528
    %v530 = vpop.xlane.xlu0 %529
    %v531 = vsub.f32 %v527, %v530
    %v532 = vmul.f32 %v531, 1.442695
    %v533 = vpow.pop %v532
    %v534 = vsel %vm160, %v533, 0.0
    %535 = vadd.xlane.f32.xlu0 %v534
    %v536 = vpop.xlane.xlu0 %535
    %v537 = vrcp.pop %v536
    %v538 = vmul.f32 %v533, %v537
    %v539 = vpack.c.bf16 %v538, %v538
    %v541 = vsel %vm160, %v539, 0
    %543 = vmatprep.subr.bf16.mxu0 0
    %544 = vmatpush1.bf16.msra.mxu0 0
    %545 = vmatprep.subr.bf16.mxu0 0
    %546 = vmatpush1.bf16.msra.mxu0 0
    %547 = vmatprep.subr.bf16.mxu0 0
    %548 = vmatpush1.bf16.msra.mxu0 0
    %549 = vmatprep.subr.bf16.mxu0 0
    %550 = vmatpush1.bf16.msra.mxu0 0
    %551 = vmatprep.subr.bf16.mxu0 0
    %552 = vmatpush1.bf16.msra.mxu0 0
    %553 = vmatprep.subr.bf16.mxu0 0
    %554 = vmatpush1.bf16.msra.mxu0 0
    %555 = vmatprep.subr.bf16.mxu0 0
    %556 = vmatpush1.bf16.msra.mxu0 0
    %557 = vmatprep.subr.bf16.mxu0 0
    %558 = vmatpush1.bf16.msra.mxu0 %v440
    %559 = vmatprep.subr.bf16.mxu0 0
    %560 = vmatpush2.bf16.msra.mxu0 0
    %561 = vmatprep.subr.bf16.mxu0 0
    %562 = vmatpush2.bf16.msra.mxu0 0
    %563 = vmatprep.subr.bf16.mxu0 0
    %564 = vmatpush2.bf16.msra.mxu0 0
    %565 = vmatprep.subr.bf16.mxu0 0
    %566 = vmatpush2.bf16.msra.mxu0 0
    %567 = vmatprep.subr.bf16.mxu0 0
    %568 = vmatpush2.bf16.msra.mxu0 0
    %569 = vmatprep.subr.bf16.mxu0 0
    %570 = vmatpush2.bf16.msra.mxu0 0
    %571 = vmatprep.subr.bf16.mxu0 0
    %572 = vmatpush2.bf16.msra.mxu0 0
    %573 = vmatprep.subr.bf16.mxu0 0
    %574 = vmatpush2.bf16.msra.mxu0 0
    %575 = vmatprep.mubr.bf16.mxu0 0
    %576 = vmatmul.mubr.bf16.gmra.mxu0 %v541
    %v577 = vpop.f32.mrf.mxu0
    %v578 = vadd.f32 0.0, %v577
    %v579 = vpop.f32.mrf.mxu0
    %v580 = vpop.f32.mrf.mxu0
    %v581 = vpop.f32.mrf.mxu0
    %582 = vdwg.mxu0
    %584 = vrot.lane.b32.xlu0 %v366, 8
    %v585 = vpop.permute.xlu0 %584
    %588 = vrot.lane.b32.xlu0 %v477, 16
    %v589 = vpop.permute.xlu0 %588
    %592 = vrot.lane.b32.xlu0 %v578, 24
    %v593 = vpop.permute.xlu0 %592
    %v595 = vsel %vm160, %v265, %v585
    %vm596 = vcmask 130048
    %v597 = vsel %vm596, %v595, %v589
    %vm598 = vcmask 195584
    %v599 = vsel %vm598, %v597, %v593
    %v600 = vpack.c.bf16 %v599, %v599
    %v601 = vld [vmem:[%s2] sm:$0xf]
    %v602 = vld [vmem:[%s2 + $0x4] sm:$0xf]
    %v603 = vld [vmem:[%s2 + $0x8] sm:$0xf]
    %v604 = vld [vmem:[%s2 + $0xc] sm:$0xf]
    %v609 = vunpack.c.l.b16 %v601
    %v610 = vunpack.c.l.b16 %v602
    %v611 = vunpack.c.l.b16 %v603
    %v612 = vunpack.c.l.b16 %v604
    %v613 = vpack.c.b16 %v610, %v609
    %v614 = vpack.c.b16 %v612, %v611
    %v618 = vsel %vm61, %v600, 0
    %620 = vmatprep.subr.bf16.mxu0 0
    %621 = vmatpush1.bf16.msra.mxu0 0
    %622 = vmatprep.subr.bf16.mxu0 0
    %623 = vmatpush1.bf16.msra.mxu0 0
    %624 = vmatprep.subr.bf16.mxu0 0
    %625 = vmatpush1.bf16.msra.mxu0 0
    %626 = vmatprep.subr.bf16.mxu0 0
    %627 = vmatpush1.bf16.msra.mxu0 0
    %628 = vmatprep.subr.bf16.mxu0 0
    %629 = vmatpush1.bf16.msra.mxu0 0
    %630 = vmatprep.subr.bf16.mxu0 0
    %631 = vmatpush1.bf16.msra.mxu0 0
    %632 = vmatprep.subr.bf16.mxu0 0
    %633 = vmatpush1.bf16.msra.mxu0 %v614
    %634 = vmatprep.subr.bf16.mxu0 0
    %635 = vmatpush1.bf16.msra.mxu0 %v613
    %636 = vmatprep.subr.bf16.mxu0 0
    %637 = vmatpush2.bf16.msra.mxu0 0
    %638 = vmatprep.subr.bf16.mxu0 0
    %639 = vmatpush2.bf16.msra.mxu0 0
    %640 = vmatprep.subr.bf16.mxu0 0
    %641 = vmatpush2.bf16.msra.mxu0 0
    %642 = vmatprep.subr.bf16.mxu0 0
    %643 = vmatpush2.bf16.msra.mxu0 0
    %644 = vmatprep.subr.bf16.mxu0 0
    %645 = vmatpush2.bf16.msra.mxu0 0
    %646 = vmatprep.subr.bf16.mxu0 0
    %647 = vmatpush2.bf16.msra.mxu0 0
    %648 = vmatprep.subr.bf16.mxu0 0
    %649 = vmatpush2.bf16.msra.mxu0 0
    %650 = vmatprep.subr.bf16.mxu0 0
    %651 = vmatpush2.bf16.msra.mxu0 0
    %652 = vmatprep.mubr.bf16.mxu0 0
    %653 = vmatmul.mubr.bf16.gmra.mxu0 %v618
    %v654 = vpop.f32.mrf.mxu0
    %v655 = vadd.f32 0.0, %v654
    %v656 = vpop.f32.mrf.mxu0
    %v657 = vpop.f32.mrf.mxu0
    %v658 = vpop.f32.mrf.mxu0
    %659 = vdwg.mxu0
    %v660 = vadd.f32 %v58, %v655
    %v661 = vld [vmem:[%s8] sm:$0x1]
    %v662 = vmul.f32 %v660, %v660
    %v663 = vsel %vm61, %v662, 0.0
    %664 = vadd.xlane.f32.xlu0 %v663
    %v665 = vpop.xlane.xlu0 %664
    %v666 = vmul.f32 %v665, %v65
    %v667 = vadd.f32 %v666, 1e-06
    %v668 = vrsqrt.pop %v667
    %v669 = vmul.f32 %v660, %v668
    %v671 = vlaneseq
    %v672 = vshrl.u32 %v671, 7
    %v673 = vsub.s32 0, %v672
    %v674 = vrot.slane %v661, %v673
    %v676 = vmul.f32 %v669, %v674
    %v677 = vpack.c.bf16 %v676, %v676
    %v678 = vld [vmem:[%s3] sm:$0xf]
    %v679 = vld [vmem:[%s3 + $0x4] sm:$0xf]
    %v680 = vld [vmem:[%s3 + $0x8] sm:$0xf]
    %v681 = vld [vmem:[%s3 + $0xc] sm:$0xf]
    %v686 = vunpack.c.l.b16 %v678
    %v687 = vunpack.c.l.b16 %v679
    %v688 = vunpack.c.l.b16 %v680
    %v689 = vunpack.c.l.b16 %v681
    %v690 = vpack.c.b16 %v687, %v686
    %v691 = vpack.c.b16 %v689, %v688
    %v695 = vsel %vm61, %v677, 0
    %697 = vmatprep.subr.bf16.mxu0 0
    %698 = vmatpush1.bf16.msra.mxu0 0
    %699 = vmatprep.subr.bf16.mxu0 0
    %700 = vmatpush1.bf16.msra.mxu0 0
    %701 = vmatprep.subr.bf16.mxu0 0
    %702 = vmatpush1.bf16.msra.mxu0 0
    %703 = vmatprep.subr.bf16.mxu0 0
    %704 = vmatpush1.bf16.msra.mxu0 0
    %705 = vmatprep.subr.bf16.mxu0 0
    %706 = vmatpush1.bf16.msra.mxu0 0
    %707 = vmatprep.subr.bf16.mxu0 0
    %708 = vmatpush1.bf16.msra.mxu0 0
    %709 = vmatprep.subr.bf16.mxu0 0
    %710 = vmatpush1.bf16.msra.mxu0 %v691
    %711 = vmatprep.subr.bf16.mxu0 0
    %712 = vmatpush1.bf16.msra.mxu0 %v690
    %713 = vmatprep.subr.bf16.mxu0 0
    %714 = vmatpush2.bf16.msra.mxu0 0
    %715 = vmatprep.subr.bf16.mxu0 0
    %716 = vmatpush2.bf16.msra.mxu0 0
    %717 = vmatprep.subr.bf16.mxu0 0
    %718 = vmatpush2.bf16.msra.mxu0 0
    %719 = vmatprep.subr.bf16.mxu0 0
    %720 = vmatpush2.bf16.msra.mxu0 0
    %721 = vmatprep.subr.bf16.mxu0 0
    %722 = vmatpush2.bf16.msra.mxu0 0
    %723 = vmatprep.subr.bf16.mxu0 0
    %724 = vmatpush2.bf16.msra.mxu0 0
    %725 = vmatprep.subr.bf16.mxu0 0
    %726 = vmatpush2.bf16.msra.mxu0 0
    %727 = vmatprep.subr.bf16.mxu0 0
    %728 = vmatpush2.bf16.msra.mxu0 0
    %729 = vmatprep.mubr.bf16.mxu0 0
    %730 = vmatmul.mubr.bf16.gmra.mxu0 %v695
    %v731 = vpop.f32.mrf.mxu0
    %v732 = vadd.f32 0.0, %v731
    %v733 = vpop.f32.mrf.mxu0
    %v734 = vpop.f32.mrf.mxu0
    %v735 = vpop.f32.mrf.mxu0
    %736 = vdwg.mxu0
    %v737 = vsub.f32 0.0, %v732
    %v738 = vmul.f32 %v737, 1.442695
    %v739 = vpow.pop %v738
    %v740 = vadd.f32 %v739, 1.0
    %v741 = vrcp.pop %v740
    %v742 = vmul.f32 %v732, %v741
    %744 = vrot.lane.b32.xlu0 %v732, 64
    %v745 = vpop.permute.xlu0 %744
    %v747 = vmul.f32 %v742, %v745
    %v748 = vpack.c.bf16 %v747, %v747
    %v749 = vld [vmem:[%s4] sm:$0xf]
    %v750 = vld [vmem:[%s4 + $0x4] sm:$0xf]
    %v751 = vld [vmem:[%s4 + $0x8] sm:$0xf]
    %v752 = vld [vmem:[%s4 + $0xc] sm:$0xf]
    %v753 = vld [vmem:[%s4 + $0x10] sm:$0xf]
    %v754 = vld [vmem:[%s4 + $0x14] sm:$0xf]
    %v755 = vld [vmem:[%s4 + $0x18] sm:$0xf]
    %v756 = vld [vmem:[%s4 + $0x1c] sm:$0xf]
    %v765 = vunpack.c.l.b16 %v749
    %v766 = vunpack.c.l.b16 %v750
    %v767 = vunpack.c.l.b16 %v751
    %v768 = vunpack.c.l.b16 %v752
    %v769 = vunpack.c.l.b16 %v753
    %v770 = vunpack.c.l.b16 %v754
    %v771 = vunpack.c.l.b16 %v755
    %v772 = vunpack.c.l.b16 %v756
    %v773 = vpack.c.b16 %v766, %v765
    %v774 = vpack.c.b16 %v768, %v767
    %v775 = vpack.c.b16 %v770, %v769
    %v776 = vpack.c.b16 %v772, %v771
    %vm781 = vcmask 523264
    %v783 = vsel %vm781, %v748, 0
    %785 = vmatprep.subr.bf16.mxu0 0
    %786 = vmatpush1.bf16.msra.mxu0 0
    %787 = vmatprep.subr.bf16.mxu0 0
    %788 = vmatpush1.bf16.msra.mxu0 0
    %789 = vmatprep.subr.bf16.mxu0 0
    %790 = vmatpush1.bf16.msra.mxu0 0
    %791 = vmatprep.subr.bf16.mxu0 0
    %792 = vmatpush1.bf16.msra.mxu0 0
    %793 = vmatprep.subr.bf16.mxu0 0
    %794 = vmatpush1.bf16.msra.mxu0 %v776
    %795 = vmatprep.subr.bf16.mxu0 0
    %796 = vmatpush1.bf16.msra.mxu0 %v775
    %797 = vmatprep.subr.bf16.mxu0 0
    %798 = vmatpush1.bf16.msra.mxu0 %v774
    %799 = vmatprep.subr.bf16.mxu0 0
    %800 = vmatpush1.bf16.msra.mxu0 %v773
    %801 = vmatprep.subr.bf16.mxu0 0
    %802 = vmatpush2.bf16.msra.mxu0 0
    %803 = vmatprep.subr.bf16.mxu0 0
    %804 = vmatpush2.bf16.msra.mxu0 0
    %805 = vmatprep.subr.bf16.mxu0 0
    %806 = vmatpush2.bf16.msra.mxu0 0
    %807 = vmatprep.subr.bf16.mxu0 0
    %808 = vmatpush2.bf16.msra.mxu0 0
    %809 = vmatprep.subr.bf16.mxu0 0
    %810 = vmatpush2.bf16.msra.mxu0 0
    %811 = vmatprep.subr.bf16.mxu0 0
    %812 = vmatpush2.bf16.msra.mxu0 0
    %813 = vmatprep.subr.bf16.mxu0 0
    %814 = vmatpush2.bf16.msra.mxu0 0
    %815 = vmatprep.subr.bf16.mxu0 0
    %816 = vmatpush2.bf16.msra.mxu0 0
    %817 = vmatprep.mubr.bf16.mxu0 0
    %818 = vmatmul.mubr.bf16.gmra.mxu0 %v783
    %v819 = vpop.f32.mrf.mxu0
    %v820 = vadd.f32 0.0, %v819
    %v821 = vpop.f32.mrf.mxu0
    %v822 = vpop.f32.mrf.mxu0
    %v823 = vpop.f32.mrf.mxu0
    %824 = vdwg.mxu0
    %v825 = vadd.f32 %v660, %v820
    %826 = vst.msk [vmem:[#allocation7] sm:$0xff] %vm61, %v825
    // Predicated region
    $region46: #{tpu_custom_call.1} parent=1 // pred_check
      _
    $region47: #{tpu_custom_call.1} parent=1 // pred_check_branch
      %828 = sbr.rel (0) target = $region49
    $region48: #{tpu_custom_call.1} parent=1 // pred_region
      %s830 = ssub.s32 128, 128
      %831 = vsyncadd [#allocation4], %s830
      %s833 = sshll.u32 [#allocation7], 4
      %s834 = int_to_ptr.vmem [resolvable:$true] %s833
      %836 = dma.vmem_to_hbm [thread:$0]  %s834, 128, %s9, [#allocation4]
    $region49: #{tpu_custom_call.1} parent=1 // pred_fallthru
      _
    // Predicated region
    $region50: #{tpu_custom_call.1} parent=1 // pred_check
      _
    $region51: #{tpu_custom_call.1} parent=1 // pred_check_branch
      %838 = sbr.rel (0) target = $region53
    $region52: #{tpu_custom_call.1} parent=1 // pred_region
      %839 = dma.done [#allocation4], 128
    $region53: #{tpu_custom_call.1} parent=1 // pred_fallthru
      _
    %840 = vsyncpa [#allocation3], 1
    %841 = vsyncpa [#allocation6], 1
    %842 = vsyncpa [#allocation4], 1

</llo_original>
